<compile_context>
chip_gen: v7x
topology: tpu7x:2x2x1
jax: 0.10.0
libtpu: 0.0.40
codegen_flags: <defaults>
</compile_context>

<pallas_src>
import functools

import jax
import jax.numpy as jnp
from jax.experimental import pallas as pl
from jax.experimental.pallas import tpu as pltpu

LANE = 128
SUBLANE = 8


def _dice_kernel(x_ref, t_ref, pt_out, s_out, *, rows, block_rows,
                 chunks_per_core, num_chunks, needs_mask, needs_guard):
    c = pl.program_id(0)          # core / outer split
    i = pl.program_id(1)          # chunk index within this core's range
    chunk = c * chunks_per_core + i

    @pl.when(i == 0)
    def _init():
        pt_out[...] = jnp.zeros_like(pt_out)
        s_out[...] = jnp.zeros_like(s_out)

    def _make_body(mask_rows):
        def _body():
            x = x_ref[...].astype(jnp.float32)
            t = t_ref[...].astype(jnp.float32)
            # sigmoid(x) == 0.5 * tanh(0.5 * x) + 0.5 : one EUP push instead
            # of exp + reciprocal; mul/add are cheap VPU ops.
            p = 0.5 * jnp.tanh(0.5 * x) + 0.5
            pt = p * t            # intersection terms
            s = p + t             # denominator terms
            if mask_rows:
                # Row-level validity only (the ragged lane tail is handled in
                # the wrapper); indices stay small -> no int32 overflow.
                row = jax.lax.broadcasted_iota(jnp.int32, (block_rows, LANE), 0)
                valid = chunk * block_rows + row < rows
                # jnp.where (select), NOT a multiplicative mask: rows past the
                # end of the array may contain NaN/Inf garbage in VMEM.
                pt = jnp.where(valid, pt, 0.0)
                s = jnp.where(valid, s, 0.0)
            # Fold block rows into one (8, 128) vreg of partial sums: pure
            # VPU adds (layout-preserving reshape); cross-lane reduce deferred
            # to the wrapper.
            pt_out[...] += pt.reshape(-1, SUBLANE, LANE).sum(axis=0)
            s_out[...] += s.reshape(-1, SUBLANE, LANE).sum(axis=0)
        return _body

    if needs_mask:
        # Only the final chunk pays for the mask; steady-state chunks run the
        # unmasked path.  Duplicate chunks from the 2-core split (chunk >=
        # num_chunks) match neither predicate and are skipped.
        pl.when(chunk < num_chunks - 1)(_make_body(False))
        pl.when(chunk == num_chunks - 1)(_make_body(True))
    elif needs_guard:
        pl.when(chunk < num_chunks)(_make_body(False))
    else:
        _make_body(False)()


def _tpu_defaults():
    """(block_rows, vmem_limit_bytes, max_cores) tuned per TPU generation."""
    kind = ""
    try:
        kind = (jax.devices()[0].device_kind or "").lower()
    except Exception:
        pass
    if "v7" in kind:
        # 2 TCs/chip, 64 MiB VMEM, 3.2 TB/s HBM: big blocks, VMEM headroom.
        return 8192, 48 * 1024 * 1024, 2
    if "v6" in kind:
        # Single TC, 128 MiB VMEM, ~1.4 TB/s.
        return 8192, 64 * 1024 * 1024, 1
    if "v5e" in kind or "v5 lite" in kind or "v5lite" in kind:
        # Single TC, ~0.8 TB/s: per-step overhead already hidden at 4096 rows;
        # explicit 32 MiB limit (scoped default is only 16 MiB).
        return 4096, 32 * 1024 * 1024, 1
    if "v4" in kind or "v5p" in kind or "v5" in kind:
        # Megacore parts: 2 TCs share the grid.
        return 8192, 64 * 1024 * 1024, 2
    # Unknown generation: conservative.
    return 4096, 32 * 1024 * 1024, 1


def dice_loss(logits, targets, smooth=1.0, block_rows=None):
    """Pallas implementation of DiceLoss.forward (returns a scalar f32).

    Inputs are streamed in their native dtype (pass bf16 logits / int8 / bool
    targets straight through for proportionally less HBM traffic); the cast
    to f32 happens inside the kernel.
    """
    n = logits.size
    x = logits.reshape(-1)        # native dtype; cast happens in-kernel
    t = targets.reshape(-1)

    def_block_rows, vmem_limit, max_cores = _tpu_defaults()
    if block_rows is None:
        block_rows = def_block_rows

    rows = n // LANE              # full lane-width rows streamed via the kernel
    main = rows * LANE

    inter = jnp.float32(0.0)
    denom = jnp.float32(0.0)

    if rows > 0:
        # No full-array pad/copy: when n % 128 == 0 this is a pure reshape.
        if main == n:
            x2 = x.reshape(rows, LANE)
            t2 = t.reshape(rows, LANE)
        else:
            x2 = x[:main].reshape(rows, LANE)
            t2 = t[:main].reshape(rows, LANE)

        br = min(block_rows, rows)
        br = max(SUBLANE, (br // SUBLANE) * SUBLANE)
        num_chunks = pl.cdiv(rows, br)

        # 2-core split only on multi-TC generations (and only when there is
        # more than one chunk); single-TC parts keep the simple index map.
        num_cores = max_cores if num_chunks >= max_cores else 1
        chunks_per_core = pl.cdiv(num_chunks, num_cores)
        padded_chunks = num_cores * chunks_per_core

        needs_guard = padded_chunks != num_chunks    # duplicate/clamped chunks
        needs_mask = (num_chunks * br) != rows       # ragged last row-block

        def in_index_map(c, i):
            chunk = c * chunks_per_core + i
            if needs_guard:
                chunk = jnp.minimum(chunk, num_chunks - 1)
            return (chunk, 0)

        kernel = functools.partial(
            _dice_kernel, rows=rows, block_rows=br,
            chunks_per_core=chunks_per_core, num_chunks=num_chunks,
            needs_mask=needs_mask, needs_guard=needs_guard)

        bytes_in = x2.size * x2.dtype.itemsize + t2.size * t2.dtype.itemsize
        bytes_out = 2 * num_cores * SUBLANE * LANE * 4

        pt_parts, s_parts = pl.pallas_call(
            kernel,
            out_shape=(
                jax.ShapeDtypeStruct((num_cores, SUBLANE, LANE), jnp.float32),
                jax.ShapeDtypeStruct((num_cores, SUBLANE, LANE), jnp.float32),
            ),
            grid_spec=pltpu.PrefetchScalarGridSpec(
                num_scalar_prefetch=0,
                grid=(num_cores, chunks_per_core),
                in_specs=[
                    pl.BlockSpec((br, LANE), in_index_map),
                    pl.BlockSpec((br, LANE), in_index_map),
                ],
                out_specs=[
                    pl.BlockSpec((None, SUBLANE, LANE), lambda c, i: (c, 0, 0)),
                    pl.BlockSpec((None, SUBLANE, LANE), lambda c, i: (c, 0, 0)),
                ],
            ),
            compiler_params=pltpu.CompilerParams(
                dimension_semantics=("parallel", "arbitrary"),
                vmem_limit_bytes=vmem_limit,
            ),
            cost_estimate=pl.CostEstimate(
                flops=6 * main,
                transcendentals=main,
                bytes_accessed=bytes_in + bytes_out,
            ),
        )(x2, t2)

        inter = jnp.sum(pt_parts)
        denom = jnp.sum(s_parts)

    if main != n:
        # Ragged lane tail (< 128 elements): trivial XLA op in the wrapper;
        # avoids materialising a padded/sliced full copy of both inputs.
        xt = x[main:].astype(jnp.float32)
        tt = t[main:].astype(jnp.float32)
        p_tail = jax.nn.sigmoid(xt)
        inter = inter + jnp.sum(p_tail * tt)
        denom = denom + jnp.sum(p_tail) + jnp.sum(tt)

    smooth = jnp.float32(smooth)
    return 1.0 - (2.0 * inter + smooth) / (denom + smooth)


def dice_loss_ref(logits, targets, smooth=1.0):
    p = jax.nn.sigmoid(logits.reshape(-1).astype(jnp.float32))
    t = targets.reshape(-1).astype(jnp.float32)
    inter = jnp.sum(p * t)
    return 1.0 - (2.0 * inter + smooth) / (jnp.sum(p) + jnp.sum(t) + smooth)


if __name__ == "__main__":
    key = jax.random.PRNGKey(0)
    k1, k2 = jax.random.split(key)
    # Shapes consistent with a segmentation logit map: (N, C, H, W) = (2, 4, 16, 16)
    x = jax.random.normal(k1, (2, 4, 16, 16), dtype=jnp.float32)
    tgt = (jax.random.uniform(k2, (2, 4, 16, 16)) > 0.5).astype(jnp.float32)

    loss_fn = jax.jit(dice_loss)
    loss = jax.block_until_ready(loss_fn(x, tgt))
    ref = jax.block_until_ready(dice_loss_ref(x, tgt, smooth=1.0))

    assert jnp.allclose(loss, ref, atol=1e-5, rtol=1e-5), (loss, ref)
    print("KERNEL_OK")
</pallas_src>

<mosaic_0001>
module attributes {stable_mosaic.version = 11 : i64} {
  func.func @_dice_kernel(%arg0: i32, %arg1: i32, %arg2: memref<16x128xf32, #tpu.memory_space<vmem>>, %arg3: memref<16x128xf32, #tpu.memory_space<vmem>>, %arg4: memref<1x8x128xf32, #tpu.memory_space<vmem>>, %arg5: memref<1x8x128xf32, #tpu.memory_space<vmem>>) attributes {dimension_semantics = [#tpu.dimension_semantics<parallel>, #tpu.dimension_semantics<arbitrary>], iteration_bounds = array<i64: 1, 1>, scalar_prefetch = 0 : i64, scratch_operands = 0 : i64, tpu.core_type = #tpu.core_type<tc>, window_params = [{transform_indices = @transform_0, window_bounds = array<i64: 16, 128>}, {transform_indices = @transform_1, window_bounds = array<i64: 16, 128>}, {transform_indices = @transform_2, window_bounds = array<i64: 1, 8, 128>}, {transform_indices = @transform_3, window_bounds = array<i64: 1, 8, 128>}]} {
    %c0_i32 = arith.constant 0 : i32
    %0 = arith.cmpi eq, %arg1, %c0_i32 : i32
    %1 = arith.extui %0 : i1 to i32
    %c0_i32_0 = arith.constant 0 : i32
    %2 = arith.cmpi ne, %1, %c0_i32_0 : i32
    scf.if %2 {
      %cst_20 = arith.constant 0.000000e+00 : f32
      %30 = vector.broadcast %cst_20 : f32 to vector<8x128xf32>
      %c0_21 = arith.constant 0 : index
      %c0_22 = arith.constant 0 : index
      %c0_23 = arith.constant 0 : index
      %31 = vector.load %arg4[%c0_21, %c0_22, %c0_23] : memref<1x8x128xf32, #tpu.memory_space<vmem>>, vector<1x8x128xf32>
      %32 = vector.shape_cast %31 : vector<1x8x128xf32> to vector<8x128xf32>
      %33 = vector.shape_cast %30 : vector<8x128xf32> to vector<1x8x128xf32>
      tpu.vector_store %arg4[%c0_21, %c0_22, %c0_23], %33 {strides = array<i32>} : memref<1x8x128xf32, #tpu.memory_space<vmem>>, vector<1x8x128xf32>,
      %cst_24 = arith.constant 0.000000e+00 : f32
      %34 = vector.broadcast %cst_24 : f32 to vector<8x128xf32>
      %c0_25 = arith.constant 0 : index
      %c0_26 = arith.constant 0 : index
      %c0_27 = arith.constant 0 : index
      %35 = vector.load %arg5[%c0_25, %c0_26, %c0_27] : memref<1x8x128xf32, #tpu.memory_space<vmem>>, vector<1x8x128xf32>
      %36 = vector.shape_cast %35 : vector<1x8x128xf32> to vector<8x128xf32>
      %37 = vector.shape_cast %34 : vector<8x128xf32> to vector<1x8x128xf32>
      tpu.vector_store %arg5[%c0_25, %c0_26, %c0_27], %37 {strides = array<i32>} : memref<1x8x128xf32, #tpu.memory_space<vmem>>, vector<1x8x128xf32>,
    } else {
    }
    %c0 = arith.constant 0 : index
    %c0_1 = arith.constant 0 : index
    %3 = vector.load %arg2[%c0, %c0_1] : memref<16x128xf32, #tpu.memory_space<vmem>>, vector<16x128xf32>
    %c0_2 = arith.constant 0 : index
    %c0_3 = arith.constant 0 : index
    %4 = vector.load %arg3[%c0_2, %c0_3] : memref<16x128xf32, #tpu.memory_space<vmem>>, vector<16x128xf32>
    %cst = arith.constant 5.000000e-01 : f32
    %5 = vector.broadcast %cst : f32 to vector<16x128xf32>
    %6 = arith.mulf %5, %3 : vector<16x128xf32>
    %7 = math.tanh %6 : vector<16x128xf32>
    %cst_4 = arith.constant 5.000000e-01 : f32
    %8 = vector.broadcast %cst_4 : f32 to vector<16x128xf32>
    %9 = arith.mulf %8, %7 : vector<16x128xf32>
    %cst_5 = arith.constant 5.000000e-01 : f32
    %10 = vector.broadcast %cst_5 : f32 to vector<16x128xf32>
    %11 = arith.addf %9, %10 : vector<16x128xf32>
    %12 = arith.mulf %11, %4 : vector<16x128xf32>
    %13 = arith.addf %11, %4 : vector<16x128xf32>
    %c0_6 = arith.constant 0 : index
    %c0_7 = arith.constant 0 : index
    %c0_8 = arith.constant 0 : index
    %14 = vector.load %arg4[%c0_6, %c0_7, %c0_8] : memref<1x8x128xf32, #tpu.memory_space<vmem>>, vector<1x8x128xf32>
    %15 = vector.shape_cast %14 : vector<1x8x128xf32> to vector<8x128xf32>
    %16 = vector.shape_cast %12 : vector<16x128xf32> to vector<2x8x128xf32>
    %cst_9 = arith.constant dense<0.000000e+00> : vector<8x128xf32>
    %17 = vector.multi_reduction <add>, %16, %cst_9 [0] : vector<2x8x128xf32> to vector<8x128xf32>
    %18 = arith.addf %15, %17 : vector<8x128xf32>
    %c0_10 = arith.constant 0 : index
    %c0_11 = arith.constant 0 : index
    %c0_12 = arith.constant 0 : index
    %19 = vector.load %arg4[%c0_10, %c0_11, %c0_12] : memref<1x8x128xf32, #tpu.memory_space<vmem>>, vector<1x8x128xf32>
    %20 = vector.shape_cast %19 : vector<1x8x128xf32> to vector<8x128xf32>
    %21 = vector.shape_cast %18 : vector<8x128xf32> to vector<1x8x128xf32>
    tpu.vector_store %arg4[%c0_10, %c0_11, %c0_12], %21 {strides = array<i32>} : memref<1x8x128xf32, #tpu.memory_space<vmem>>, vector<1x8x128xf32>,
    %c0_13 = arith.constant 0 : index
    %c0_14 = arith.constant 0 : index
    %c0_15 = arith.constant 0 : index
    %22 = vector.load %arg5[%c0_13, %c0_14, %c0_15] : memref<1x8x128xf32, #tpu.memory_space<vmem>>, vector<1x8x128xf32>
    %23 = vector.shape_cast %22 : vector<1x8x128xf32> to vector<8x128xf32>
    %24 = vector.shape_cast %13 : vector<16x128xf32> to vector<2x8x128xf32>
    %cst_16 = arith.constant dense<0.000000e+00> : vector<8x128xf32>
    %25 = vector.multi_reduction <add>, %24, %cst_16 [0] : vector<2x8x128xf32> to vector<8x128xf32>
    %26 = arith.addf %23, %25 : vector<8x128xf32>
    %c0_17 = arith.constant 0 : index
    %c0_18 = arith.constant 0 : index
    %c0_19 = arith.constant 0 : index
    %27 = vector.load %arg5[%c0_17, %c0_18, %c0_19] : memref<1x8x128xf32, #tpu.memory_space<vmem>>, vector<1x8x128xf32>
    %28 = vector.shape_cast %27 : vector<1x8x128xf32> to vector<8x128xf32>
    %29 = vector.shape_cast %26 : vector<8x128xf32> to vector<1x8x128xf32>
    tpu.vector_store %arg5[%c0_17, %c0_18, %c0_19], %29 {strides = array<i32>} : memref<1x8x128xf32, #tpu.memory_space<vmem>>, vector<1x8x128xf32>,
    return
  }
  func.func @transform_0(%arg0: i32, %arg1: i32) -> (i32, i32) {
    %c1_i32 = arith.constant 1 : i32
    %0 = arith.muli %arg0, %c1_i32 : i32
    %1 = arith.addi %0, %arg1 : i32
    %c0_i32 = arith.constant 0 : i32
    %c0_i32_0 = arith.constant 0 : i32
    return %1, %c0_i32 : i32, i32
  }
  func.func @transform_1(%arg0: i32, %arg1: i32) -> (i32, i32) {
    %c1_i32 = arith.constant 1 : i32
    %0 = arith.muli %arg0, %c1_i32 : i32
    %1 = arith.addi %0, %arg1 : i32
    %c0_i32 = arith.constant 0 : i32
    %c0_i32_0 = arith.constant 0 : i32
    return %1, %c0_i32 : i32, i32
  }
  func.func @transform_2(%arg0: i32, %arg1: i32) -> (i32, i32, i32) {
    %c0_i32 = arith.constant 0 : i32
    %c0_i32_0 = arith.constant 0 : i32
    %c0_i32_1 = arith.constant 0 : i32
    return %arg0, %c0_i32, %c0_i32_0 : i32, i32, i32
  }
  func.func @transform_3(%arg0: i32, %arg1: i32) -> (i32, i32, i32) {
    %c0_i32 = arith.constant 0 : i32
    %c0_i32_0 = arith.constant 0 : i32
    %c0_i32_1 = arith.constant 0 : i32
    return %arg0, %c0_i32, %c0_i32_0 : i32, i32, i32
  }
}

</mosaic_0001>

<llo_original>
// kernel: dice_loss.1
$region0: #{dice_loss.1}
  #allocation0 [shape = 'u32[]', space=smem, size = 0x4, offset = 0x4, fixed_abs, tag = 'smem constant byte address 0x4 - core index']
  #allocation1 [shape = 'u32[144,128]{1,0:T(1,128)}', space=vmem, size = 0x12000, scoped, tag = 'internal scratch']
  %s0 = inlined_call_operand.vmem [shape: f32[16,128], index: 0, kind: input, shape index: {}]
  %s1 = inlined_call_operand.vmem [shape: f32[16,128], index: 1, kind: input, shape index: {}]
  %s2 = inlined_call_operand.vmem [shape: f32[1,8,128], index: 2, kind: output, shape index: {0}]
  %s3 = inlined_call_operand.vmem [shape: f32[1,8,128], index: 3, kind: output, shape index: {1}]
  %4 = xla_tuple %s2, %s3
  %s5 = sld [smem:[#allocation0]]
  $region30: #{dice_loss.1} parent=0
    _
  %s7 = ssub.s32 1, %s5
  %s8 = scalar_select 0, %s7, %s5
  // Predicated region
  $region2: #{dice_loss.1} parent=0 // pred_check
    _
  $region3: #{dice_loss.1} parent=0 // pred_check_branch
    %10 = sbr.rel (0) target = $region5
  $region4: #{dice_loss.1} parent=0 // pred_region
    %s11 = sadd.s32 0, 0
    %s12 = smul.u32 2, %s11
    %p13 = scmp.lt.s32.totalorder %s12, 1
    %s14 = scalar_select %p13, %s12, 1
    %s15 = smul.addr %s14, 8
    %s16 = scalar_lea.vmem %s0, %s15
    %s17 = sadd.s32 0, 0
    %s18 = smul.u32 2, %s17
  $region5: #{dice_loss.1} parent=0 // pred_fallthru
    _
  // Predicated region
  $region6: #{dice_loss.1} parent=0 // pred_check
    _
  $region7: #{dice_loss.1} parent=0 // pred_check_branch
    %20 = sbr.rel (0) target = $region9
  $region8: #{dice_loss.1} parent=0 // pred_region
    %s21 = sadd.s32 0, 0
    %s22 = smul.u32 2, %s21
    %p23 = scmp.lt.s32.totalorder %s22, 1
    %s24 = scalar_select %p23, %s22, 1
    %s25 = smul.addr %s24, 8
    %s26 = scalar_lea.vmem %s1, %s25
    %s27 = sadd.s32 0, 0
    %s28 = smul.u32 2, %s27
  $region9: #{dice_loss.1} parent=0 // pred_fallthru
    _
  %s29 = sadd.s32 0, 0
  %s30 = smul.u32 2, %s29
  %p31 = scmp.lt.s32.totalorder %s30, 1
  %s32 = scalar_select %p31, %s30, 1
  %s33 = smul.addr %s32, 8
  %s34 = scalar_lea.vmem %s0, %s33
  %s35 = sadd.s32 0, 0
  %s36 = smul.u32 2, %s35
  %p37 = scmp.lt.s32.totalorder %s36, 1
  %s38 = scalar_select %p37, %s36, 1
  %s39 = smul.addr %s38, 8
  %s40 = scalar_lea.vmem %s1, %s39
  %s41 = sadd.s32 0, 0
  %s42 = smul.u32 2, %s41
  %p43 = scmp.lt.s32.totalorder %s42, 1
  %s44 = scalar_select %p43, %s42, 1
  %s45 = smul.addr %s44, 8
  %s46 = scalar_lea.vmem %s0, %s45
  %s47 = sadd.s32 0, 0
  %s48 = smul.u32 2, %s47
  %s49 = sadd.s32 0, 0
  %s50 = smul.u32 2, %s49
  %p51 = scmp.lt.s32.totalorder %s50, 1
  %s52 = scalar_select %p51, %s50, 1
  %s53 = smul.addr %s52, 8
  %s54 = scalar_lea.vmem %s1, %s53
  %s55 = sadd.s32 0, 0
  %s56 = smul.u32 2, %s55
  %p57 = scmp.eq.s32.totalorder 0, 0
  // Predicated region
  $region10: #{dice_loss.1} parent=0 // pred_check
    %p58 = pneg %p57
  $region11: #{dice_loss.1} parent=0 // pred_check_branch
    %60 = sbr.rel (%p58) target = $region13
  $region12: #{dice_loss.1} parent=0 // pred_region
    %61 = vst [vmem:[%s2] sm:$0xff] 0.0
    %62 = vst [vmem:[%s3] sm:$0xff] 0.0
  $region13: #{dice_loss.1} parent=0 // pred_fallthru
    _
  %v63 = vld [vmem:[%s46] sm:$0xff]
  %v64 = vld [vmem:[%s46 + $0x8] sm:$0xff]
  %v65 = vld [vmem:[%s54] sm:$0xff]
  %v66 = vld [vmem:[%s54 + $0x8] sm:$0xff]
  %v67 = vmul.f32 %v63, 0.5
  %v68 = vmul.f32 %v64, 0.5
  %v69 = vtanh.pop %v67
  %v70 = vtanh.pop %v68
  %v71 = vmul.f32 %v69, 0.5
  %v72 = vmul.f32 %v70, 0.5
  %v73 = vadd.f32 %v71, 0.5
  %v74 = vadd.f32 %v72, 0.5
  %v75 = vmul.f32 %v73, %v65
  %v76 = vmul.f32 %v74, %v66
  %v77 = vadd.f32 %v73, %v65
  %v78 = vadd.f32 %v74, %v66
  %v79 = vld [vmem:[%s2] sm:$0xff]
  %v80 = vadd.f32 %v75, %v76
  %v81 = vadd.f32 %v79, %v80
  %82 = vst [vmem:[%s2] sm:$0xff] %v81
  %v83 = vld [vmem:[%s3] sm:$0xff]
  %v84 = vadd.f32 %v77, %v78
  %v85 = vadd.f32 %v83, %v84
  %86 = vst [vmem:[%s3] sm:$0xff] %v85
  // Predicated region
  $region14: #{dice_loss.1} parent=0 // pred_check
    _
  $region15: #{dice_loss.1} parent=0 // pred_check_branch
    %88 = sbr.rel (0) target = $region17
  $region16: #{dice_loss.1} parent=0 // pred_region
    _
  $region17: #{dice_loss.1} parent=0 // pred_fallthru
    _
  // Predicated region
  $region18: #{dice_loss.1} parent=0 // pred_check
    _
  $region19: #{dice_loss.1} parent=0 // pred_check_branch
    %90 = sbr.rel (0) target = $region21
  $region20: #{dice_loss.1} parent=0 // pred_region
    _
  $region21: #{dice_loss.1} parent=0 // pred_fallthru
    _
  // Predicated region
  $region22: #{dice_loss.1} parent=0 // pred_check
    _
  $region23: #{dice_loss.1} parent=0 // pred_check_branch
    %92 = sbr.rel (0) target = $region25
  $region24: #{dice_loss.1} parent=0 // pred_region
    _
  $region25: #{dice_loss.1} parent=0 // pred_fallthru
    _
  // Predicated region
  $region26: #{dice_loss.1} parent=0 // pred_check
    _
  $region27: #{dice_loss.1} parent=0 // pred_check_branch
    %94 = sbr.rel (0) target = $region29
  $region28: #{dice_loss.1} parent=0 // pred_region
    _
  $region29: #{dice_loss.1} parent=0 // pred_fallthru
    _

</llo_original>
